<compile_context>
chip_gen: v5e
topology: v5e:2x2
jax: 0.10.0
libtpu: 0.0.40
codegen_flags: <defaults>
</compile_context>

<pallas_src>
import math

import jax
import jax.numpy as jnp
from jax.experimental import pallas as pl
from jax.experimental.pallas import tpu as pltpu


_LANE = 128
_SUBLANE = 8
_VMEM_BUDGET = 40 * 1024 * 1024   # keep resident x + double-buffered tiles v7x-safe


def _round_up(v, m):
    return ((v + m - 1) // m) * m


def _npc_kernel(inv_t_ref, x_ref, memt_ref, out_ref):
    # (tile_b, D) @ (D, tile_n) -> (tile_b, tile_n); bf16 inputs, f32 MXU accumulation.
    s = jax.lax.dot_general(
        x_ref[...],
        memt_ref[...],
        dimension_numbers=(((1,), (0,)), ((), ())),
        preferred_element_type=jnp.float32,
    )
    # 1/T precomputed on the host -> single cheap vector multiply in the epilogue.
    out_ref[...] = (s * inv_t_ref[0]).astype(out_ref.dtype)


def non_parametric_classifier_forward(
    x,
    memory_t,
    params,
    *,
    tile_n=2048,
    tile_b=256,
    max_resident_x_bytes=8 << 20,
    out_dtype=jnp.float32,
):
    """out = (x @ memory.T) / T computed with a Pallas TPU kernel.

    Args:
      x:        (B, D) features (bf16 or f32).
      memory_t: (D, N) memory bank stored TRANSPOSED (bf16 or f32) for lane-dense tiles.
      params:   (2,) float32 [T, momentum] (momentum unused in the forward).
    """
    B, D = x.shape
    D2, N = memory_t.shape
    assert D == D2, "feature dims must match"

    # Scalar 1/T once on the host (full f32 precision), passed via SMEM.
    inv_t = (1.0 / params[0].astype(jnp.float32)).reshape(1)

    out_itemsize = jnp.dtype(out_dtype).itemsize

    # ---- choose batch residency --------------------------------------------------------
    resident = (B * D * x.dtype.itemsize) <= max_resident_x_bytes
    if resident:
        rows = B
    else:
        rows = min(_round_up(min(tile_b, B), _SUBLANE), _round_up(B, _SUBLANE))

    # ---- choose class tile (lane-aligned), shrink to fit the VMEM budget ----------------
    tile_n = min(tile_n, _round_up(N, _LANE))
    tile_n = max(_LANE, _round_up(tile_n, _LANE))

    def vmem_bytes(tn):
        return (2 * rows * D * x.dtype.itemsize            # x block (double-buffered)
                + 2 * D * tn * memory_t.dtype.itemsize     # bank tiles
                + 2 * rows * tn * out_itemsize)            # output tiles

    while vmem_bytes(tile_n) > _VMEM_BUDGET and tile_n > _LANE:
        tile_n = max(_LANE, _round_up(tile_n // 2, _LANE))

    # ---- pad the class axis so tile_n divides it (tail columns are zeros, sliced off) ---
    N_pad = _round_up(N, tile_n)
    if N_pad != N:
        memory_t = jnp.pad(memory_t, ((0, 0), (0, N_pad - N)))
    n_tiles = N_pad // tile_n

    if resident:
        # 1-D grid over class tiles; x block index is constant so it is DMA'd once and the
        # memory bank is streamed exactly once. On v7x the two TensorCores shard the class
        # axis, so each reads half the bank.
        B_pad = B
        x_call = x
        grid = (n_tiles,)
        in_specs = [
            pl.BlockSpec(memory_space=pltpu.SMEM),                 # inv_T scalar
            pl.BlockSpec((B, D), lambda j: (0, 0)),                # resident x block
            pl.BlockSpec((D, tile_n), lambda j: (0, j)),           # lane-dense bank tile
        ]
        out_specs = pl.BlockSpec((B, tile_n), lambda j: (0, j))
        dim_sem = ("parallel",)
        bytes_accessed = (B * D * x.dtype.itemsize
                          + memory_t.size * memory_t.dtype.itemsize
                          + B * N_pad * out_itemsize)
    else:
        # Huge-x fallback: class axis OUTER, batch axis inner -> the bank tile's block
        # index only changes on the outer axis, so its DMA is skipped across inner steps
        # and the bank is still streamed only once; the (small) x tiles are re-read.
        tile_b_eff = rows
        B_pad = _round_up(B, tile_b_eff)
        x_call = jnp.pad(x, ((0, B_pad - B), (0, 0))) if B_pad != B else x
        b_tiles = B_pad // tile_b_eff
        grid = (n_tiles, b_tiles)
        in_specs = [
            pl.BlockSpec(memory_space=pltpu.SMEM),
            pl.BlockSpec((tile_b_eff, D), lambda j, i: (i, 0)),
            pl.BlockSpec((D, tile_n), lambda j, i: (0, j)),
        ]
        out_specs = pl.BlockSpec((tile_b_eff, tile_n), lambda j, i: (i, j))
        dim_sem = ("parallel", "arbitrary")
        bytes_accessed = (n_tiles * B_pad * D * x.dtype.itemsize
                          + memory_t.size * memory_t.dtype.itemsize
                          + B_pad * N_pad * out_itemsize)

    # Explicit scoped-VMEM limit: enough for the chosen tiles + headroom, capped below
    # v7x's 64 MiB physical per-TC VMEM (also fine on v5e/v6e's 128 MiB).
    vmem_limit = int(min(max(vmem_bytes(tile_n) + (8 << 20), 32 << 20), 56 << 20))

    out = pl.pallas_call(
        _npc_kernel,
        out_shape=jax.ShapeDtypeStruct((B_pad, N_pad), out_dtype),
        grid=grid,
        in_specs=in_specs,
        out_specs=out_specs,
        compiler_params=pltpu.CompilerParams(
            dimension_semantics=dim_sem,
            vmem_limit_bytes=vmem_limit,
        ),
        cost_estimate=pl.CostEstimate(
            flops=2 * B_pad * D * N_pad,
            transcendentals=0,
            bytes_accessed=int(bytes_accessed),
        ),
    )(inv_t, x_call, memory_t)

    return out[:B, :N]


if __name__ == "__main__":
    # Module configuration (small, consistent with the PyTorch __init__). outputSize is
    # intentionally NOT a multiple of the class tile to exercise the padded-tail path.
    inputSize = 32       # feature dimension D
    outputSize = 3000    # number of instances N in the memory bank
    batch = 8
    T = 0.05
    momentum = 0.5

    key = jax.random.PRNGKey(0)
    kx, kmem = jax.random.split(key)

    # Deterministic buffer init mirroring the PyTorch module:
    #   stdv = 1 / sqrt(inputSize / 3);  memory ~ U(-stdv, stdv)
    stdv = 1.0 / math.sqrt(inputSize / 3)
    memory = jax.random.uniform(
        kmem, (outputSize, inputSize), dtype=jnp.float32, minval=-stdv, maxval=stdv,
    )
    params = jnp.array([T, momentum], dtype=jnp.float32)

    # Input features (L2-normalized, as is typical for this classifier).
    x = jax.random.normal(kx, (batch, inputSize), dtype=jnp.float32)
    x = x / jnp.linalg.norm(x, axis=1, keepdims=True)

    # bf16 bank / features: intentional accuracy-for-bandwidth trade-off on this
    # HBM-bound kernel (the /T scaling amplifies bf16 rounding on the logits).
    x_bf16 = x.astype(jnp.bfloat16)
    memory_t_bf16 = memory.T.astype(jnp.bfloat16)

    # Reference on the same bf16 inputs with f32 accumulation.
    ref = (x_bf16.astype(jnp.float32) @ memory_t_bf16.astype(jnp.float32)) / T

    # Path 1: resident-x (typical) -> 1-D class grid, memory bank streamed once.
    out = non_parametric_classifier_forward(x_bf16, memory_t_bf16, params)
    out = jax.block_until_ready(out)
    assert out.shape == (batch, outputSize)
    assert jnp.allclose(out, ref, atol=1e-3, rtol=1e-3), "mismatch vs reference (resident path)"

    # Path 2: force the batch-tiled fallback (class axis outer -> bank still read once).
    out2 = non_parametric_classifier_forward(
        x_bf16, memory_t_bf16, params,
        max_resident_x_bytes=0, tile_b=8, tile_n=1024,
    )
    out2 = jax.block_until_ready(out2)
    assert out2.shape == (batch, outputSize)
    assert jnp.allclose(out2, ref, atol=1e-3, rtol=1e-3), "mismatch vs reference (tiled path)"

    # TODO(synk): backward pass (memory-bank momentum update via index_copy_) is a
    # training-time side effect, not part of the forward kernel; omitted here.
    print("KERNEL_OK")
</pallas_src>

<mosaic_0001>
module attributes {stable_mosaic.version = 11 : i64} {
  func.func @_npc_kernel(%arg0: i32, %arg1: memref<1xf32, #tpu.memory_space<smem>>, %arg2: memref<8x32xbf16, #tpu.memory_space<vmem>>, %arg3: memref<32x2048xbf16, #tpu.memory_space<vmem>>, %arg4: memref<8x2048xf32, #tpu.memory_space<vmem>>) attributes {dimension_semantics = [#tpu.dimension_semantics<parallel>], iteration_bounds = array<i64: 2>, scalar_prefetch = 0 : i64, scratch_operands = 0 : i64, tpu.core_type = #tpu.core_type<tc>, window_params = [{transform_indices = @transform_0, window_bounds = array<i64: 1>}, {pipeline_mode = #tpu.pipeline_mode<synchronous>, transform_indices = @transform_1, window_bounds = array<i64: 8, 32>}, {transform_indices = @transform_2, window_bounds = array<i64: 32, 2048>}, {transform_indices = @transform_3, window_bounds = array<i64: 8, 2048>}]} {
    %c0 = arith.constant 0 : index
    %c0_0 = arith.constant 0 : index
    %0 = vector.load %arg2[%c0, %c0_0] : memref<8x32xbf16, #tpu.memory_space<vmem>>, vector<8x32xbf16>
    %c0_1 = arith.constant 0 : index
    %c0_2 = arith.constant 0 : index
    %1 = vector.load %arg3[%c0_1, %c0_2] : memref<32x2048xbf16, #tpu.memory_space<vmem>>, vector<32x2048xbf16>
    %cst = arith.constant dense<0.000000e+00> : vector<8x2048xf32>
    %2 = tpu.matmul %0, %1, %cst {dimension_numbers = #tpu.dot_dimension_numbers<[1], [0], [0], [1], [0, 0, 1, 1], [], []>} : vector<8x32xbf16>, vector<32x2048xbf16>, vector<8x2048xf32> -> vector<8x2048xf32>
    %c0_3 = arith.constant 0 : index
    %3 = memref.load %arg1[%c0_3] : memref<1xf32, #tpu.memory_space<smem>>
    %4 = vector.broadcast %3 : f32 to vector<8x2048xf32>
    %5 = arith.mulf %2, %4 : vector<8x2048xf32>
    %c0_4 = arith.constant 0 : index
    %c0_5 = arith.constant 0 : index
    %6 = vector.load %arg4[%c0_4, %c0_5] : memref<8x2048xf32, #tpu.memory_space<vmem>>, vector<8x2048xf32>
    tpu.vector_store %arg4[%c0_4, %c0_5], %5 {strides = array<i32>} : memref<8x2048xf32, #tpu.memory_space<vmem>>, vector<8x2048xf32>,
    return
  }
  func.func @transform_0(%arg0: i32) -> i32 {
    %c0_i32 = arith.constant 0 : i32
    %c0_i32_0 = arith.constant 0 : i32
    return %c0_i32 : i32
  }
  func.func @transform_1(%arg0: i32) -> (i32, i32) {
    %c0_i32 = arith.constant 0 : i32
    %c0_i32_0 = arith.constant 0 : i32
    %c0_i32_1 = arith.constant 0 : i32
    return %c0_i32, %c0_i32_0 : i32, i32
  }
  func.func @transform_2(%arg0: i32) -> (i32, i32) {
    %c0_i32 = arith.constant 0 : i32
    %c0_i32_0 = arith.constant 0 : i32
    return %c0_i32, %arg0 : i32, i32
  }
  func.func @transform_3(%arg0: i32) -> (i32, i32) {
    %c0_i32 = arith.constant 0 : i32
    %c0_i32_0 = arith.constant 0 : i32
    return %c0_i32, %arg0 : i32, i32
  }
}

</mosaic_0001>

<llo_original>
// kernel: tpu_custom_call.1
$region0: #{tpu_custom_call.1}
  #allocation0 [shape = 'u32[]', space=smem, size = 0x4, offset = 0x4, fixed_abs, tag = 'smem constant byte address 0x4 - core index']
  #allocation1 [shape = 'u32[72,128]{1,0:T(1,128)}', space=vmem, size = 0x9000, scoped, tag = 'internal scratch']
  #allocation2 [shape = 'f32[1]{0:T(128)S(6)}', space=smem, size = 0x200, scoped, tag = 'scoped memory for tpu_custom_call.1']
  %s0 = inlined_call_operand.<no memory space> [shape: f32[1], index: 0, kind: input, shape index: {}]
  %s1 = inlined_call_operand.hbm [shape: bf16[8,32], index: 1, kind: input, shape index: {}]
  %s2 = inlined_call_operand.hbm [shape: bf16[32,4096], index: 2, kind: input, shape index: {}]
  %s3 = inlined_call_operand.hbm [shape: f32[8,4096], index: 3, kind: output, shape index: {}]
  %s4 = sld [smem:[#allocation0]]
  $region53: #{tpu_custom_call.1} parent=0
    _
  %s6 = ssub.s32 1, %s4
  %s7 = scalar_select 0, %s6, %s4
  %8 = sst [smem:[#allocation2]] %s0
  $region1: #{tpu_custom_call.1} parent=0
    #allocation3 [shape = 'u8[2048]{0}', space=vmem, size = 0x800, scoped, tag = 'input window, operand 1, single buffered']
    #allocation4 [shape = 's32[2]{0}', space=sflag, size = 0x8, scoped, tag = 'scoped memory for tpu_custom_call.1']
    #allocation5 [shape = 's32[2]{0}', space=sflag, size = 0x8, scoped, tag = 'scoped memory for tpu_custom_call.1']
    #allocation6 [shape = 'u8[262144]{0}', space=vmem, size = 0x40000, scoped, tag = 'input window, operand 2']
    #allocation7 [shape = 's32[2]{0}', space=sflag, size = 0x8, scoped, tag = 'scoped memory for tpu_custom_call.1']
    #allocation8 [shape = 'u8[131072]{0}', space=vmem, size = 0x20000, scoped, tag = 'output window, operand 0']
    %9 = vsyncpa [#allocation4], 0
    %10 = vsyncpa [#allocation7], 0
    %s11 = scalar_lea.sflag [#allocation7], 1
    %12 = vsyncpa %s11, 0
    %13 = vsyncpa [#allocation5], 0
    %s14 = scalar_lea.sflag [#allocation5], 1
    %15 = vsyncpa %s14, 0
    loop: start=0, step=1, limit=4
    $region2: #{tpu_custom_call.1} parent=1 // loop_pre_header
      _
    $region3: #{tpu_custom_call.1} parent=1 // loop_header
      %s17 = sphi 0, %s21
      %p18 = scmp.ge.s32.totalorder %s17, 4
      %s25 = sphi 0, %s25
      %s27 = sphi 0, %s25
      %s28 = sphi 0, %s27
      %s42 = sphi 0, %s28
      %s46 = sphi 0, %s46
      %s48 = sphi 0, %s46
      %s49 = sphi 0, %s48
      %s63 = sphi 0, %s49
      %s69 = sphi 0, %s71
      %s72 = sphi 0, %s69
      %s73 = sphi 0, %s72
      %s89 = sphi 0, %s73
      %s95 = sphi 0, %s97
      %s98 = sphi 0, %s95
      %s99 = sphi 0, %s98
      %s115 = sphi 0, %s99
    $region4: #{tpu_custom_call.1} parent=1 // loop_header_branch
      %20 = sbr.rel (%p18) target = $region8
    $region5: #{tpu_custom_call.1} parent=1 // loop_body
      %s22 = ssub.s32 %s17, 1
      %s23 = ssub.s32 %s17, 2
      %s24 = sadd.s32 %s17, 1
      %s26 = sadd.s32 %s25, 1
      %p29 = scmp.eq.s32.totalorder %s17, 1
      %p30 = scmp.ne.s32.totalorder %s25, %s27
      %p31 = scmp.eq.s32.totalorder %s17, 0
      %p32 = por %p30, %p31
      %p33 = scmp.ne.s32.totalorder %s25, %s27
      %p34 = scmp.eq.s32.totalorder %s22, 1
      %p35 = por %p33, %p34
      %p36 = scmp.ne.s32.totalorder %s27, %s28
      %p37 = scmp.eq.s32.totalorder %s22, 0
      %p38 = por %p36, %p37
      %p39 = scmp.ne.s32.totalorder %s27, %s28
      %p40 = scmp.eq.s32.totalorder %s23, 1
      %p41 = por %p39, %p40
      %p43 = scmp.ne.s32.totalorder %s28, %s42
      %p44 = scmp.eq.s32.totalorder %s23, 0
      %p45 = por %p43, %p44
      %s47 = sadd.s32 %s46, 1
      %p50 = scmp.eq.s32.totalorder %s17, 1
      %p51 = scmp.ne.s32.totalorder %s46, %s48
      %p52 = scmp.eq.s32.totalorder %s17, 0
      %p53 = por %p51, %p52
      %p54 = scmp.ne.s32.totalorder %s46, %s48
      %p55 = scmp.eq.s32.totalorder %s22, 1
      %p56 = por %p54, %p55
      %p57 = scmp.ne.s32.totalorder %s48, %s49
      %p58 = scmp.eq.s32.totalorder %s22, 0
      %p59 = por %p57, %p58
      %p60 = scmp.ne.s32.totalorder %s48, %s49
      %p61 = scmp.eq.s32.totalorder %s23, 1
      %p62 = por %p60, %p61
      %p64 = scmp.ne.s32.totalorder %s49, %s63
      %p65 = scmp.eq.s32.totalorder %s23, 0
      %p66 = por %p64, %p65
      %s67 = ssub.s32 %s17, %s24
      %p68 = scmp.eq.s32.totalorder %s67, 0
      %s70 = sadd.s32 %s69, 1
      %s71 = scalar_select %p68, %s69, %s70
      %p74 = pneg %p68
      %p75 = scmp.eq.s32.totalorder %s17, 1
      %p76 = por %p74, %p75
      %p77 = scmp.ne.s32.totalorder %s69, %s72
      %p78 = scmp.eq.s32.totalorder %s17, 0
      %p79 = por %p77, %p78
      %p80 = scmp.ne.s32.totalorder %s69, %s72
      %p81 = scmp.eq.s32.totalorder %s22, 1
      %p82 = por %p80, %p81
      %p83 = scmp.ne.s32.totalorder %s72, %s73
      %p84 = scmp.eq.s32.totalorder %s22, 0
      %p85 = por %p83, %p84
      %p86 = scmp.ne.s32.totalorder %s72, %s73
      %p87 = scmp.eq.s32.totalorder %s23, 1
      %p88 = por %p86, %p87
      %p90 = scmp.ne.s32.totalorder %s73, %s89
      %p91 = scmp.eq.s32.totalorder %s23, 0
      %p92 = por %p90, %p91
      %s93 = ssub.s32 %s17, %s24
      %p94 = scmp.eq.s32.totalorder %s93, 0
      %s96 = sadd.s32 %s95, 1
      %s97 = scalar_select %p94, %s95, %s96
      %p100 = pneg %p94
      %p101 = scmp.eq.s32.totalorder %s17, 1
      %p102 = por %p100, %p101
      %p103 = scmp.ne.s32.totalorder %s95, %s98
      %p104 = scmp.eq.s32.totalorder %s17, 0
      %p105 = por %p103, %p104
      %p106 = scmp.ne.s32.totalorder %s95, %s98
      %p107 = scmp.eq.s32.totalorder %s22, 1
      %p108 = por %p106, %p107
      %p109 = scmp.ne.s32.totalorder %s98, %s99
      %p110 = scmp.eq.s32.totalorder %s22, 0
      %p111 = por %p109, %p110
      %p112 = scmp.ne.s32.totalorder %s98, %s99
      %p113 = scmp.eq.s32.totalorder %s23, 1
      %p114 = por %p112, %p113
      %p116 = scmp.ne.s32.totalorder %s99, %s115
      %p117 = scmp.eq.s32.totalorder %s23, 0
      %p118 = por %p116, %p117
      %p119 = scmp.le.s32.totalorder 1, %s17
      %p120 = scmp.lt.s32.totalorder %s17, 3
      %p121 = pnand %p119, %p120
      %p122 = pneg %p121
      // Predicated region
      $region9: #{tpu_custom_call.1} parent=5 // pred_check
        _
      $region10: #{tpu_custom_call.1} parent=5 // pred_check_branch
        %124 = sbr.rel (%p121) target = $region12
      $region11: #{tpu_custom_call.1} parent=5 // pred_region
        %s125 = ssub.s32 %s17, 1
        // Predicated region
        $region13: #{tpu_custom_call.1} parent=11 // pred_check
          %p126 = pneg %p38
        $region14: #{tpu_custom_call.1} parent=11 // pred_check_branch
          %128 = sbr.rel (%p126) target = $region16
        $region15: #{tpu_custom_call.1} parent=11 // pred_region
          _
        $region16: #{tpu_custom_call.1} parent=11 // pred_fallthru
          _
        // Predicated region
        $region17: #{tpu_custom_call.1} parent=11 // pred_check
          %p129 = pneg %p59
        $region18: #{tpu_custom_call.1} parent=11 // pred_check_branch
          %131 = sbr.rel (%p129) target = $region20
        $region19: #{tpu_custom_call.1} parent=11 // pred_region
          %133 = vsyncadd [#allocation4], 0
          %s135 = sshll.u32 %s1, 4
          %s136 = int_to_ptr.hbm [resolvable:$true] %s135
          %s137 = sshll.u32 [#allocation3], 4
          %s138 = int_to_ptr.vmem [resolvable:$true] %s137
          %140 = dma.hbm_to_vmem [thread:$0]  %s136, 64, %s138, [#allocation4]
        $region20: #{tpu_custom_call.1} parent=11 // pred_fallthru
          _
      $region12: #{tpu_custom_call.1} parent=5 // pred_fallthru
        _
      %p141 = scmp.lt.s32.totalorder %s17, 2
      // Predicated region
      $region21: #{tpu_custom_call.1} parent=5 // pred_check
        %p142 = pneg %p141
      $region22: #{tpu_custom_call.1} parent=5 // pred_check_branch
        %144 = sbr.rel (%p142) target = $region24
      $region23: #{tpu_custom_call.1} parent=5 // pred_region
        // Predicated region
        $region25: #{tpu_custom_call.1} parent=23 // pred_check
          %p145 = pneg %p79
        $region26: #{tpu_custom_call.1} parent=23 // pred_check_branch
          %147 = sbr.rel (%p145) target = $region28
        $region27: #{tpu_custom_call.1} parent=23 // pred_region
          %s148 = sand.u32 %s69, 1
          %s149 = scalar_lea.sflag [#allocation7], %s148
          %s150 = sand.u32 %s69, 1
          %s151 = smul.addr %s150, 256
          %s152 = scalar_lea.vmem [#allocation6], %s151
          %s153 = smul.u32 16, %s17
          %155 = vsyncadd %s149, 0
          %s156 = smul.addr %s153, 4
          %s157 = scalar_lea.hbm %s2, %s156
          %s158 = sshll.u32 %s157, 4
          %s159 = int_to_ptr.hbm [resolvable:$true] %s158
          %s160 = sshll.u32 %s152, 4
          %s161 = int_to_ptr.vmem [resolvable:$true] %s160
          %166 = dma.hbm_to_vmem [thread:$0]  %s159, 4096, %s161, %s149, 2048, 1024, 64
        $region28: #{tpu_custom_call.1} parent=23 // pred_fallthru
          _
      $region24: #{tpu_custom_call.1} parent=5 // pred_fallthru
        _
      %p167 = scmp.le.s32.totalorder 1, %s17
      %p168 = scmp.lt.s32.totalorder %s17, 3
      %p169 = pnand %p167, %p168
      %p170 = pneg %p169
      // Predicated region
      $region29: #{tpu_custom_call.1} parent=5 // pred_check
        _
      $region30: #{tpu_custom_call.1} parent=5 // pred_check_branch
        %172 = sbr.rel (%p169) target = $region32
      $region31: #{tpu_custom_call.1} parent=5 // pred_region
        %s173 = ssub.s32 %s17, 1
        // Predicated region
        $region33: #{tpu_custom_call.1} parent=31 // pred_check
          %p174 = pneg %p59
        $region34: #{tpu_custom_call.1} parent=31 // pred_check_branch
          %176 = sbr.rel (%p174) target = $region36
        $region35: #{tpu_custom_call.1} parent=31 // pred_region
          %178 = dma.done [#allocation4], 64
        $region36: #{tpu_custom_call.1} parent=31 // pred_fallthru
          _
        %s179 = sand.u32 %s72, 1
        %s180 = scalar_lea.sflag [#allocation7], %s179
        %s181 = sand.u32 %s72, 1
        %s182 = smul.addr %s181, 256
        %s183 = scalar_lea.vmem [#allocation6], %s182
        // Predicated region
        $region37: #{tpu_custom_call.1} parent=31 // pred_check
          %p184 = pneg %p85
        $region38: #{tpu_custom_call.1} parent=31 // pred_check_branch
          %186 = sbr.rel (%p184) target = $region40
        $region39: #{tpu_custom_call.1} parent=31 // pred_region
          %188 = dma.done %s180, 4096
        $region40: #{tpu_custom_call.1} parent=31 // pred_fallthru
          _
        %p189 = pneg %p38
        %p190 = pneg %p35
        %p191 = pneg %p59
        %p192 = pneg %p56
        %s193 = sand.u32 %s72, 1
        %s194 = scalar_lea.sflag [#allocation7], %s193
        %s195 = sand.u32 %s72, 1
        %s196 = smul.addr %s195, 256
        %s197 = scalar_lea.vmem [#allocation6], %s196
        %p198 = pneg %p85
        %p199 = pneg %p82
        %p200 = pneg %p111
        %p201 = pneg %p108
        %s202 = sand.u32 %s98, 1
        %s203 = scalar_lea.sflag [#allocation5], %s202
        %s204 = sand.u32 %s98, 1
        %s205 = smul.addr %s204, 128
        %s206 = scalar_lea.vmem [#allocation8], %s205
        %s207 = smul.u32 16, %s22
        %s208 = smul.u32 16, %s22
        %v210 = vld [vmem:[#allocation3] sm:$0xf]
        %v211 = vld [vmem:[%s183] sm:$0xff]
        %v212 = vld [vmem:[%s183 + $0x8] sm:$0xff]
        %v213 = vld [vmem:[%s183 + $0x10] sm:$0xff]
        %v214 = vld [vmem:[%s183 + $0x18] sm:$0xff]
        %v215 = vld [vmem:[%s183 + $0x20] sm:$0xff]
        %v216 = vld [vmem:[%s183 + $0x28] sm:$0xff]
        %v217 = vld [vmem:[%s183 + $0x30] sm:$0xff]
        %v218 = vld [vmem:[%s183 + $0x38] sm:$0xff]
        %v219 = vld [vmem:[%s183 + $0x40] sm:$0xff]
        %v220 = vld [vmem:[%s183 + $0x48] sm:$0xff]
        %v221 = vld [vmem:[%s183 + $0x50] sm:$0xff]
        %v222 = vld [vmem:[%s183 + $0x58] sm:$0xff]
        %v223 = vld [vmem:[%s183 + $0x60] sm:$0xff]
        %v224 = vld [vmem:[%s183 + $0x68] sm:$0xff]
        %v225 = vld [vmem:[%s183 + $0x70] sm:$0xff]
        %v226 = vld [vmem:[%s183 + $0x78] sm:$0xff]
        %v227 = vld [vmem:[%s183 + $0x80] sm:$0xff]
        %v228 = vld [vmem:[%s183 + $0x88] sm:$0xff]
        %v229 = vld [vmem:[%s183 + $0x90] sm:$0xff]
        %v230 = vld [vmem:[%s183 + $0x98] sm:$0xff]
        %v231 = vld [vmem:[%s183 + $0xa0] sm:$0xff]
        %v232 = vld [vmem:[%s183 + $0xa8] sm:$0xff]
        %v233 = vld [vmem:[%s183 + $0xb0] sm:$0xff]
        %v234 = vld [vmem:[%s183 + $0xb8] sm:$0xff]
        %v235 = vld [vmem:[%s183 + $0xc0] sm:$0xff]
        %v236 = vld [vmem:[%s183 + $0xc8] sm:$0xff]
        %v237 = vld [vmem:[%s183 + $0xd0] sm:$0xff]
        %v238 = vld [vmem:[%s183 + $0xd8] sm:$0xff]
        %v239 = vld [vmem:[%s183 + $0xe0] sm:$0xff]
        %v240 = vld [vmem:[%s183 + $0xe8] sm:$0xff]
        %v241 = vld [vmem:[%s183 + $0xf0] sm:$0xff]
        %v242 = vld [vmem:[%s183 + $0xf8] sm:$0xff]
        %v275 = vunpack.c.l.b16 %v211
        %v276 = vunpack.c.h.b16 %v211
        %v277 = vunpack.c.l.b16 %v212
        %v278 = vunpack.c.h.b16 %v212
        %v279 = vunpack.c.l.b16 %v213
        %v280 = vunpack.c.h.b16 %v213
        %v281 = vunpack.c.l.b16 %v214
        %v282 = vunpack.c.h.b16 %v214
        %v283 = vunpack.c.l.b16 %v215
        %v284 = vunpack.c.h.b16 %v215
        %v285 = vunpack.c.l.b16 %v216
        %v286 = vunpack.c.h.b16 %v216
        %v287 = vunpack.c.l.b16 %v217
        %v288 = vunpack.c.h.b16 %v217
        %v289 = vunpack.c.l.b16 %v218
        %v290 = vunpack.c.h.b16 %v218
        %v291 = vunpack.c.l.b16 %v219
        %v292 = vunpack.c.h.b16 %v219
        %v293 = vunpack.c.l.b16 %v220
        %v294 = vunpack.c.h.b16 %v220
        %v295 = vunpack.c.l.b16 %v221
        %v296 = vunpack.c.h.b16 %v221
        %v297 = vunpack.c.l.b16 %v222
        %v298 = vunpack.c.h.b16 %v222
        %v299 = vunpack.c.l.b16 %v223
        %v300 = vunpack.c.h.b16 %v223
        %v301 = vunpack.c.l.b16 %v224
        %v302 = vunpack.c.h.b16 %v224
        %v303 = vunpack.c.l.b16 %v225
        %v304 = vunpack.c.h.b16 %v225
        %v305 = vunpack.c.l.b16 %v226
        %v306 = vunpack.c.h.b16 %v226
        %v307 = vunpack.c.l.b16 %v227
        %v308 = vunpack.c.h.b16 %v227
        %v309 = vunpack.c.l.b16 %v228
        %v310 = vunpack.c.h.b16 %v228
        %v311 = vunpack.c.l.b16 %v229
        %v312 = vunpack.c.h.b16 %v229
        %v313 = vunpack.c.l.b16 %v230
        %v314 = vunpack.c.h.b16 %v230
        %v315 = vunpack.c.l.b16 %v231
        %v316 = vunpack.c.h.b16 %v231
        %v317 = vunpack.c.l.b16 %v232
        %v318 = vunpack.c.h.b16 %v232
        %v319 = vunpack.c.l.b16 %v233
        %v320 = vunpack.c.h.b16 %v233
        %v321 = vunpack.c.l.b16 %v234
        %v322 = vunpack.c.h.b16 %v234
        %v323 = vunpack.c.l.b16 %v235
        %v324 = vunpack.c.h.b16 %v235
        %v325 = vunpack.c.l.b16 %v236
        %v326 = vunpack.c.h.b16 %v236
        %v327 = vunpack.c.l.b16 %v237
        %v328 = vunpack.c.h.b16 %v237
        %v329 = vunpack.c.l.b16 %v238
        %v330 = vunpack.c.h.b16 %v238
        %v331 = vunpack.c.l.b16 %v239
        %v332 = vunpack.c.h.b16 %v239
        %v333 = vunpack.c.l.b16 %v240
        %v334 = vunpack.c.h.b16 %v240
        %v335 = vunpack.c.l.b16 %v241
        %v336 = vunpack.c.h.b16 %v241
        %v337 = vunpack.c.l.b16 %v242
        %v338 = vunpack.c.h.b16 %v242
        %v339 = vpack.c.b16 %v291, %v275
        %v340 = vpack.c.b16 %v292, %v276
        %v341 = vpack.c.b16 %v293, %v277
        %v342 = vpack.c.b16 %v294, %v278
        %v343 = vpack.c.b16 %v295, %v279
        %v344 = vpack.c.b16 %v296, %v280
        %v345 = vpack.c.b16 %v297, %v281
        %v346 = vpack.c.b16 %v298, %v282
        %v347 = vpack.c.b16 %v299, %v283
        %v348 = vpack.c.b16 %v300, %v284
        %v349 = vpack.c.b16 %v301, %v285
        %v350 = vpack.c.b16 %v302, %v286
        %v351 = vpack.c.b16 %v303, %v287
        %v352 = vpack.c.b16 %v304, %v288
        %v353 = vpack.c.b16 %v305, %v289
        %v354 = vpack.c.b16 %v306, %v290
        %v355 = vpack.c.b16 %v323, %v307
        %v356 = vpack.c.b16 %v324, %v308
        %v357 = vpack.c.b16 %v325, %v309
        %v358 = vpack.c.b16 %v326, %v310
        %v359 = vpack.c.b16 %v327, %v311
        %v360 = vpack.c.b16 %v328, %v312
        %v361 = vpack.c.b16 %v329, %v313
        %v362 = vpack.c.b16 %v330, %v314
        %v363 = vpack.c.b16 %v331, %v315
        %v364 = vpack.c.b16 %v332, %v316
        %v365 = vpack.c.b16 %v333, %v317
        %v366 = vpack.c.b16 %v334, %v318
        %v367 = vpack.c.b16 %v335, %v319
        %v368 = vpack.c.b16 %v336, %v320
        %v369 = vpack.c.b16 %v337, %v321
        %v370 = vpack.c.b16 %v338, %v322
        %vm403 = vcmask 261120
        %v405 = vsel %vm403, %v210, 0
        %407 = vmatpush.bf16.msra.mxu0 0
        %408 = vmatpush.bf16.msra.mxu0 0
        %409 = vmatpush.bf16.msra.mxu0 0
        %410 = vmatpush.bf16.msra.mxu0 0
        %411 = vmatpush.bf16.msra.mxu0 0
        %412 = vmatpush.bf16.msra.mxu0 0
        %413 = vmatpush.bf16.msra.mxu0 %v355
        %414 = vmatpush.bf16.msra.mxu0 %v339
        %415 = vmatmul.bf16.gmra.mxu0 %v405
        %v416 = vpop.f32.mrf.mxu0
        %v417 = vadd.f32 0.0, %v416
        %v418 = vpop.f32.mrf.mxu0
        %419 = vdwg.mxu0
        %420 = vmatpush.bf16.msra.mxu0 0
        %421 = vmatpush.bf16.msra.mxu0 0
        %422 = vmatpush.bf16.msra.mxu0 0
        %423 = vmatpush.bf16.msra.mxu0 0
        %424 = vmatpush.bf16.msra.mxu0 0
        %425 = vmatpush.bf16.msra.mxu0 0
        %426 = vmatpush.bf16.msra.mxu0 %v356
        %427 = vmatpush.bf16.msra.mxu0 %v340
        %428 = vmatmul.bf16.gmra.mxu0 %v405
        %v429 = vpop.f32.mrf.mxu0
        %v430 = vadd.f32 0.0, %v429
        %v431 = vpop.f32.mrf.mxu0
        %432 = vdwg.mxu0
        %433 = vmatpush.bf16.msra.mxu0 0
        %434 = vmatpush.bf16.msra.mxu0 0
        %435 = vmatpush.bf16.msra.mxu0 0
        %436 = vmatpush.bf16.msra.mxu0 0
        %437 = vmatpush.bf16.msra.mxu0 0
        %438 = vmatpush.bf16.msra.mxu0 0
        %439 = vmatpush.bf16.msra.mxu0 %v357
        %440 = vmatpush.bf16.msra.mxu0 %v341
        %441 = vmatmul.bf16.gmra.mxu0 %v405
        %v442 = vpop.f32.mrf.mxu0
        %v443 = vadd.f32 0.0, %v442
        %v444 = vpop.f32.mrf.mxu0
        %445 = vdwg.mxu0
        %446 = vmatpush.bf16.msra.mxu0 0
        %447 = vmatpush.bf16.msra.mxu0 0
        %448 = vmatpush.bf16.msra.mxu0 0
        %449 = vmatpush.bf16.msra.mxu0 0
        %450 = vmatpush.bf16.msra.mxu0 0
        %451 = vmatpush.bf16.msra.mxu0 0
        %452 = vmatpush.bf16.msra.mxu0 %v358
        %453 = vmatpush.bf16.msra.mxu0 %v342
        %454 = vmatmul.bf16.gmra.mxu0 %v405
        %v455 = vpop.f32.mrf.mxu0
        %v456 = vadd.f32 0.0, %v455
        %v457 = vpop.f32.mrf.mxu0
        %458 = vdwg.mxu0
        %459 = vmatpush.bf16.msra.mxu0 0
        %460 = vmatpush.bf16.msra.mxu0 0
        %461 = vmatpush.bf16.msra.mxu0 0
        %462 = vmatpush.bf16.msra.mxu0 0
        %463 = vmatpush.bf16.msra.mxu0 0
        %464 = vmatpush.bf16.msra.mxu0 0
        %465 = vmatpush.bf16.msra.mxu0 %v359
        %466 = vmatpush.bf16.msra.mxu0 %v343
        %467 = vmatmul.bf16.gmra.mxu0 %v405
        %v468 = vpop.f32.mrf.mxu0
        %v469 = vadd.f32 0.0, %v468
        %v470 = vpop.f32.mrf.mxu0
        %471 = vdwg.mxu0
        %472 = vmatpush.bf16.msra.mxu0 0
        %473 = vmatpush.bf16.msra.mxu0 0
        %474 = vmatpush.bf16.msra.mxu0 0
        %475 = vmatpush.bf16.msra.mxu0 0
        %476 = vmatpush.bf16.msra.mxu0 0
        %477 = vmatpush.bf16.msra.mxu0 0
        %478 = vmatpush.bf16.msra.mxu0 %v360
        %479 = vmatpush.bf16.msra.mxu0 %v344
        %480 = vmatmul.bf16.gmra.mxu0 %v405
        %v481 = vpop.f32.mrf.mxu0
        %v482 = vadd.f32 0.0, %v481
        %v483 = vpop.f32.mrf.mxu0
        %484 = vdwg.mxu0
        %485 = vmatpush.bf16.msra.mxu0 0
        %486 = vmatpush.bf16.msra.mxu0 0
        %487 = vmatpush.bf16.msra.mxu0 0
        %488 = vmatpush.bf16.msra.mxu0 0
        %489 = vmatpush.bf16.msra.mxu0 0
        %490 = vmatpush.bf16.msra.mxu0 0
        %491 = vmatpush.bf16.msra.mxu0 %v361
        %492 = vmatpush.bf16.msra.mxu0 %v345
        %493 = vmatmul.bf16.gmra.mxu0 %v405
        %v494 = vpop.f32.mrf.mxu0
        %v495 = vadd.f32 0.0, %v494
        %v496 = vpop.f32.mrf.mxu0
        %497 = vdwg.mxu0
        %498 = vmatpush.bf16.msra.mxu0 0
        %499 = vmatpush.bf16.msra.mxu0 0
        %500 = vmatpush.bf16.msra.mxu0 0
        %501 = vmatpush.bf16.msra.mxu0 0
        %502 = vmatpush.bf16.msra.mxu0 0
        %503 = vmatpush.bf16.msra.mxu0 0
        %504 = vmatpush.bf16.msra.mxu0 %v362
        %505 = vmatpush.bf16.msra.mxu0 %v346
        %506 = vmatmul.bf16.gmra.mxu0 %v405
        %v507 = vpop.f32.mrf.mxu0
        %v508 = vadd.f32 0.0, %v507
        %v509 = vpop.f32.mrf.mxu0
        %510 = vdwg.mxu0
        %511 = vmatpush.bf16.msra.mxu0 0
        %512 = vmatpush.bf16.msra.mxu0 0
        %513 = vmatpush.bf16.msra.mxu0 0
        %514 = vmatpush.bf16.msra.mxu0 0
        %515 = vmatpush.bf16.msra.mxu0 0
        %516 = vmatpush.bf16.msra.mxu0 0
        %517 = vmatpush.bf16.msra.mxu0 %v363
        %518 = vmatpush.bf16.msra.mxu0 %v347
        %519 = vmatmul.bf16.gmra.mxu0 %v405
        %v520 = vpop.f32.mrf.mxu0
        %v521 = vadd.f32 0.0, %v520
        %v522 = vpop.f32.mrf.mxu0
        %523 = vdwg.mxu0
        %524 = vmatpush.bf16.msra.mxu0 0
        %525 = vmatpush.bf16.msra.mxu0 0
        %526 = vmatpush.bf16.msra.mxu0 0
        %527 = vmatpush.bf16.msra.mxu0 0
        %528 = vmatpush.bf16.msra.mxu0 0
        %529 = vmatpush.bf16.msra.mxu0 0
        %530 = vmatpush.bf16.msra.mxu0 %v364
        %531 = vmatpush.bf16.msra.mxu0 %v348
        %532 = vmatmul.bf16.gmra.mxu0 %v405
        %v533 = vpop.f32.mrf.mxu0
        %v534 = vadd.f32 0.0, %v533
        %v535 = vpop.f32.mrf.mxu0
        %536 = vdwg.mxu0
        %537 = vmatpush.bf16.msra.mxu0 0
        %538 = vmatpush.bf16.msra.mxu0 0
        %539 = vmatpush.bf16.msra.mxu0 0
        %540 = vmatpush.bf16.msra.mxu0 0
        %541 = vmatpush.bf16.msra.mxu0 0
        %542 = vmatpush.bf16.msra.mxu0 0
        %543 = vmatpush.bf16.msra.mxu0 %v365
        %544 = vmatpush.bf16.msra.mxu0 %v349
        %545 = vmatmul.bf16.gmra.mxu0 %v405
        %v546 = vpop.f32.mrf.mxu0
        %v547 = vadd.f32 0.0, %v546
        %v548 = vpop.f32.mrf.mxu0
        %549 = vdwg.mxu0
        %550 = vmatpush.bf16.msra.mxu0 0
        %551 = vmatpush.bf16.msra.mxu0 0
        %552 = vmatpush.bf16.msra.mxu0 0
        %553 = vmatpush.bf16.msra.mxu0 0
        %554 = vmatpush.bf16.msra.mxu0 0
        %555 = vmatpush.bf16.msra.mxu0 0
        %556 = vmatpush.bf16.msra.mxu0 %v366
        %557 = vmatpush.bf16.msra.mxu0 %v350
        %558 = vmatmul.bf16.gmra.mxu0 %v405
        %v559 = vpop.f32.mrf.mxu0
        %v560 = vadd.f32 0.0, %v559
        %v561 = vpop.f32.mrf.mxu0
        %562 = vdwg.mxu0
        %563 = vmatpush.bf16.msra.mxu0 0
        %564 = vmatpush.bf16.msra.mxu0 0
        %565 = vmatpush.bf16.msra.mxu0 0
        %566 = vmatpush.bf16.msra.mxu0 0
        %567 = vmatpush.bf16.msra.mxu0 0
        %568 = vmatpush.bf16.msra.mxu0 0
        %569 = vmatpush.bf16.msra.mxu0 %v367
        %570 = vmatpush.bf16.msra.mxu0 %v351
        %571 = vmatmul.bf16.gmra.mxu0 %v405
        %v572 = vpop.f32.mrf.mxu0
        %v573 = vadd.f32 0.0, %v572
        %v574 = vpop.f32.mrf.mxu0
        %575 = vdwg.mxu0
        %576 = vmatpush.bf16.msra.mxu0 0
        %577 = vmatpush.bf16.msra.mxu0 0
        %578 = vmatpush.bf16.msra.mxu0 0
        %579 = vmatpush.bf16.msra.mxu0 0
        %580 = vmatpush.bf16.msra.mxu0 0
        %581 = vmatpush.bf16.msra.mxu0 0
        %582 = vmatpush.bf16.msra.mxu0 %v368
        %583 = vmatpush.bf16.msra.mxu0 %v352
        %584 = vmatmul.bf16.gmra.mxu0 %v405
        %v585 = vpop.f32.mrf.mxu0
        %v586 = vadd.f32 0.0, %v585
        %v587 = vpop.f32.mrf.mxu0
        %588 = vdwg.mxu0
        %589 = vmatpush.bf16.msra.mxu0 0
        %590 = vmatpush.bf16.msra.mxu0 0
        %591 = vmatpush.bf16.msra.mxu0 0
        %592 = vmatpush.bf16.msra.mxu0 0
        %593 = vmatpush.bf16.msra.mxu0 0
        %594 = vmatpush.bf16.msra.mxu0 0
        %595 = vmatpush.bf16.msra.mxu0 %v369
        %596 = vmatpush.bf16.msra.mxu0 %v353
        %597 = vmatmul.bf16.gmra.mxu0 %v405
        %v598 = vpop.f32.mrf.mxu0
        %v599 = vadd.f32 0.0, %v598
        %v600 = vpop.f32.mrf.mxu0
        %601 = vdwg.mxu0
        %602 = vmatpush.bf16.msra.mxu0 0
        %603 = vmatpush.bf16.msra.mxu0 0
        %604 = vmatpush.bf16.msra.mxu0 0
        %605 = vmatpush.bf16.msra.mxu0 0
        %606 = vmatpush.bf16.msra.mxu0 0
        %607 = vmatpush.bf16.msra.mxu0 0
        %608 = vmatpush.bf16.msra.mxu0 %v370
        %609 = vmatpush.bf16.msra.mxu0 %v354
        %610 = vmatmul.bf16.gmra.mxu0 %v405
        %v611 = vpop.f32.mrf.mxu0
        %v612 = vadd.f32 0.0, %v611
        %v613 = vpop.f32.mrf.mxu0
        %614 = vdwg.mxu0
        %s615 = sld [smem:[#allocation2]]
        %v616 = vstv %s615
        %v617 = vmul.f32 %v417, %v616
        %v618 = vmul.f32 %v430, %v616
        %v619 = vmul.f32 %v443, %v616
        %v620 = vmul.f32 %v456, %v616
        %v621 = vmul.f32 %v469, %v616
        %v622 = vmul.f32 %v482, %v616
        %v623 = vmul.f32 %v495, %v616
        %v624 = vmul.f32 %v508, %v616
        %v625 = vmul.f32 %v521, %v616
        %v626 = vmul.f32 %v534, %v616
        %v627 = vmul.f32 %v547, %v616
        %v628 = vmul.f32 %v560, %v616
        %v629 = vmul.f32 %v573, %v616
        %v630 = vmul.f32 %v586, %v616
        %v631 = vmul.f32 %v599, %v616
        %v632 = vmul.f32 %v612, %v616
        %633 = vst [vmem:[%s206] sm:$0xff] %v617
        %634 = vst [vmem:[%s206 + $0x8] sm:$0xff] %v618
        %635 = vst [vmem:[%s206 + $0x10] sm:$0xff] %v619
        %636 = vst [vmem:[%s206 + $0x18] sm:$0xff] %v620
        %637 = vst [vmem:[%s206 + $0x20] sm:$0xff] %v621
        %638 = vst [vmem:[%s206 + $0x28] sm:$0xff] %v622
        %639 = vst [vmem:[%s206 + $0x30] sm:$0xff] %v623
        %640 = vst [vmem:[%s206 + $0x38] sm:$0xff] %v624
        %641 = vst [vmem:[%s206 + $0x40] sm:$0xff] %v625
        %642 = vst [vmem:[%s206 + $0x48] sm:$0xff] %v626
        %643 = vst [vmem:[%s206 + $0x50] sm:$0xff] %v627
        %644 = vst [vmem:[%s206 + $0x58] sm:$0xff] %v628
        %645 = vst [vmem:[%s206 + $0x60] sm:$0xff] %v629
        %646 = vst [vmem:[%s206 + $0x68] sm:$0xff] %v630
        %647 = vst [vmem:[%s206 + $0x70] sm:$0xff] %v631
        %648 = vst [vmem:[%s206 + $0x78] sm:$0xff] %v632
        %s649 = sand.u32 %s98, 1
        %s650 = scalar_lea.sflag [#allocation5], %s649
        %s651 = sand.u32 %s98, 1
        %s652 = smul.addr %s651, 128
        %s653 = scalar_lea.vmem [#allocation8], %s652
        // Predicated region
        $region41: #{tpu_custom_call.1} parent=31 // pred_check
          %p654 = pneg %p108
        $region42: #{tpu_custom_call.1} parent=31 // pred_check_branch
          %656 = sbr.rel (%p654) target = $region44
        $region43: #{tpu_custom_call.1} parent=31 // pred_region
          %s657 = smul.u32 16, %s22
          %659 = vsyncadd %s650, 0
          %s660 = smul.addr %s657, 8
          %s661 = scalar_lea.hbm %s3, %s660
          %s663 = sshll.u32 %s653, 4
          %s664 = int_to_ptr.vmem [resolvable:$true] %s663
          %s665 = sshll.u32 %s661, 4
          %s666 = int_to_ptr.hbm [resolvable:$true] %s665
          %668 = dma.vmem_to_hbm [thread:$0]  %s664, 2048, %s666, %s650
        $region44: #{tpu_custom_call.1} parent=31 // pred_fallthru
          _
      $region32: #{tpu_custom_call.1} parent=5 // pred_fallthru
        _
      %p669 = scmp.le.s32.totalorder 2, %s17
      // Predicated region
      $region45: #{tpu_custom_call.1} parent=5 // pred_check
        %p670 = pneg %p669
      $region46: #{tpu_custom_call.1} parent=5 // pred_check_branch
        %672 = sbr.rel (%p670) target = $region48
      $region47: #{tpu_custom_call.1} parent=5 // pred_region
        %s673 = ssub.s32 %s17, 2
        // Predicated region
        $region49: #{tpu_custom_call.1} parent=47 // pred_check
          %p674 = pneg %p114
        $region50: #{tpu_custom_call.1} parent=47 // pred_check_branch
          %676 = sbr.rel (%p674) target = $region52
        $region51: #{tpu_custom_call.1} parent=47 // pred_region
          %s677 = sand.u32 %s99, 1
          %s678 = scalar_lea.sflag [#allocation5], %s677
          %s679 = sand.u32 %s99, 1
          %s680 = smul.addr %s679, 128
          %s681 = scalar_lea.vmem [#allocation8], %s680
          %683 = dma.done %s678, 2048
        $region52: #{tpu_custom_call.1} parent=47 // pred_fallthru
          _
      $region48: #{tpu_custom_call.1} parent=5 // pred_fallthru
        _
    $region6: #{tpu_custom_call.1} parent=1 // loop_footer
      %s21 = sadd.s32 1, %s17
    $region7: #{tpu_custom_call.1} parent=1 // loop_footer_branch
      %16 = sbr.rel target = $region3
    $region8: #{tpu_custom_call.1} parent=1 // loop_exit
      _
    %684 = vsyncpa [#allocation4], 1
    %s685 = scalar_lea.sflag [#allocation4], 1
    %686 = vsyncpa %s685, 1
    %687 = vsyncpa [#allocation7], 1
    %s688 = scalar_lea.sflag [#allocation7], 1
    %689 = vsyncpa %s688, 1
    %690 = vsyncpa [#allocation5], 1
    %s691 = scalar_lea.sflag [#allocation5], 1
    %692 = vsyncpa %s691, 1

</llo_original>
